<compile_context>
chip_gen: v7x
topology: tpu7x:2x2x1
jax: 0.10.0
libtpu: 0.0.40
codegen_flags: <defaults>
</compile_context>

<pallas_src>
import jax
import jax.numpy as jnp
from jax.experimental import pallas as pl
from jax.experimental.pallas import tpu as pltpu

# Deterministic "parameters" matching GeM.__init__ defaults (freeze_p=True).
GEM_P = 3.0
GEM_EPS = 1e-6


def _gem_kernel(x_ref, o_ref):
    # x_ref: (row_tile, HW) input tile, o_ref: (row_tile, 1) output tile.
    x = x_ref[...].astype(jnp.float32)
    xc = jnp.maximum(x, GEM_EPS)                # clamp(min=eps)
    xp = xc * xc * xc                           # .pow(3): VALU, not EUP (p static)
    m = jnp.mean(xp, axis=-1, keepdims=True)    # adaptive_avg_pool2d -> (.., 1)
    out = jnp.power(m, 1.0 / GEM_P)             # .pow(1/p) on (row_tile, 1) only
    o_ref[...] = out.astype(o_ref.dtype)


def _pick_row_tile(nc: int, hw: int, itemsize: int) -> int:
    """Largest multiple-of-8 row tile whose double-buffered input fits budget."""
    # ~16 MiB of input VMEM total (2 pipeline buffers) -> safe on v5e/v6e/v7x
    # and stays well under the 32 MiB scoped-VMEM limit set below.
    per_buffer_bytes = 8 * 1024 * 1024
    rt = per_buffer_bytes // max(1, hw * itemsize)
    rt = max(8, min(1024, rt))
    rt -= rt % 8
    # No point tiling past the (8-rounded-up) row count.
    rt = min(rt, max(8, ((nc + 7) // 8) * 8))
    return rt


def gem_pool(x: jax.Array) -> jax.Array:
    """GeM pooling. x: (N, C, H, W) -> (N, C, 1, 1)."""
    N, C, H, W = x.shape
    NC, HW = N * C, H * W
    # Free reshape: NCHW is already row-major over (N*C, H*W).
    x_flat = x.reshape(NC, HW)

    row_tile = _pick_row_tile(NC, HW, x_flat.dtype.itemsize)
    grid = (pl.cdiv(NC, row_tile),)

    out_flat = pl.pallas_call(
        _gem_kernel,
        out_shape=jax.ShapeDtypeStruct((NC, 1), x.dtype),
        grid_spec=pltpu.PrefetchScalarGridSpec(
            num_scalar_prefetch=0,
            grid=grid,
            in_specs=[pl.BlockSpec((row_tile, HW), lambda i: (i, 0))],
            out_specs=pl.BlockSpec((row_tile, 1), lambda i: (i, 0)),
        ),
        compiler_params=pltpu.CompilerParams(
            dimension_semantics=("parallel",),
            vmem_limit_bytes=32 * 1024 * 1024,
        ),
    )(x_flat)

    return out_flat.reshape(N, C, 1, 1)


def gem_reference(x: jax.Array) -> jax.Array:
    xc = jnp.clip(x.astype(jnp.float32), GEM_EPS, None)
    m = jnp.mean(jnp.power(xc, GEM_P), axis=(2, 3), keepdims=True)
    return jnp.power(m, 1.0 / GEM_P).astype(x.dtype)


if __name__ == "__main__":
    key = jax.random.PRNGKey(0)
    # Small shapes consistent with a conv feature map: N=2, C=4, H=W=16.
    x = jax.random.uniform(key, (2, 4, 16, 16), dtype=jnp.float32)

    out = gem_pool(x)
    out = jax.block_until_ready(out)

    ref = gem_reference(x)
    assert out.shape == (2, 4, 1, 1), out.shape
    assert jnp.allclose(out, ref, atol=1e-5, rtol=1e-5), (
        float(jnp.max(jnp.abs(out - ref)))
    )
    print("KERNEL_OK")
</pallas_src>

<mosaic_0001>
module attributes {stable_mosaic.version = 11 : i64} {
  func.func @_gem_kernel(%arg0: i32, %arg1: memref<8x256xf32, #tpu.memory_space<vmem>>, %arg2: memref<8x1xf32, #tpu.memory_space<vmem>>) attributes {dimension_semantics = [#tpu.dimension_semantics<parallel>], iteration_bounds = array<i64: 1>, scalar_prefetch = 0 : i64, scratch_operands = 0 : i64, tpu.core_type = #tpu.core_type<tc>, window_params = [{transform_indices = @transform_0, window_bounds = array<i64: 8, 256>}, {transform_indices = @transform_1, window_bounds = array<i64: 8, 1>}]} {
    %c0 = arith.constant 0 : index
    %c0_0 = arith.constant 0 : index
    %0 = vector.load %arg1[%c0, %c0_0] : memref<8x256xf32, #tpu.memory_space<vmem>>, vector<8x256xf32>
    %cst = arith.constant 9.99999997E-7 : f32
    %1 = vector.broadcast %cst : f32 to vector<8x256xf32>
    %2 = arith.maximumf %0, %1 : vector<8x256xf32>
    %3 = arith.mulf %2, %2 : vector<8x256xf32>
    %4 = arith.mulf %3, %2 : vector<8x256xf32>
    %cst_1 = arith.constant dense<0.000000e+00> : vector<8xf32>
    %5 = vector.multi_reduction <add>, %4, %cst_1 [1] : vector<8x256xf32> to vector<8xf32>
    %6 = vector.shape_cast %5 : vector<8xf32> to vector<8x1xf32>
    %cst_2 = arith.constant 2.560000e+02 : f32
    %7 = vector.broadcast %cst_2 : f32 to vector<8x1xf32>
    %8 = arith.divf %6, %7 : vector<8x1xf32>
    %cst_3 = arith.constant 0.333333343 : f32
    %9 = vector.broadcast %cst_3 : f32 to vector<8x1xf32>
    %10 = math.powf %8, %9 : vector<8x1xf32>
    %c0_4 = arith.constant 0 : index
    %c0_5 = arith.constant 0 : index
    %11 = vector.load %arg2[%c0_4, %c0_5] : memref<8x1xf32, #tpu.memory_space<vmem>>, vector<8x1xf32>
    tpu.vector_store %arg2[%c0_4, %c0_5], %10 {strides = array<i32>} : memref<8x1xf32, #tpu.memory_space<vmem>>, vector<8x1xf32>,
    return
  }
  func.func @transform_0(%arg0: i32) -> (i32, i32) {
    %c0_i32 = arith.constant 0 : i32
    %c0_i32_0 = arith.constant 0 : i32
    return %arg0, %c0_i32 : i32, i32
  }
  func.func @transform_1(%arg0: i32) -> (i32, i32) {
    %c0_i32 = arith.constant 0 : i32
    %c0_i32_0 = arith.constant 0 : i32
    return %arg0, %c0_i32 : i32, i32
  }
}

</mosaic_0001>

<llo_original>
// kernel: tpu_custom_call.1
$region0: #{tpu_custom_call.1}
  #allocation0 [shape = 'u32[]', space=smem, size = 0x4, offset = 0x4, fixed_abs, tag = 'smem constant byte address 0x4 - core index']
  #allocation1 [shape = 'u32[144,128]{1,0:T(1,128)}', space=vmem, size = 0x12000, scoped, tag = 'internal scratch']
  %s0 = inlined_call_operand.hbm [shape: f32[8,256], index: 0, kind: input, shape index: {}]
  %s1 = inlined_call_operand.vmem [shape: f32[8,1], index: 1, kind: output, shape index: {}]
  %s2 = sld [smem:[#allocation0]]
  $region18: #{tpu_custom_call.1} parent=0
    _
  %s4 = ssub.s32 1, %s2
  %s5 = scalar_select 0, %s4, %s2
  $region1: #{tpu_custom_call.1} parent=0
    #allocation2 [shape = 'u8[8192]{0}', space=vmem, size = 0x2000, scoped, tag = 'input window, operand 0, single buffered']
    #allocation3 [shape = 's32[1]{0}', space=sflag, size = 0x4, scoped, tag = 'scoped memory for tpu_custom_call.1']
    %6 = vsyncpa [#allocation3], 0
    // Predicated region
    $region2: #{tpu_custom_call.1} parent=1 // pred_check
      _
    $region3: #{tpu_custom_call.1} parent=1 // pred_check_branch
      %8 = sbr.rel (0) target = $region5
    $region4: #{tpu_custom_call.1} parent=1 // pred_region
      %s10 = ssub.s32 256, 256
      %11 = vsyncadd [#allocation3], %s10
      %s13 = sshll.u32 [#allocation2], 4
      %s14 = int_to_ptr.vmem [resolvable:$true] %s13
      %16 = dma.hbm_to_vmem [thread:$0]  %s0, 256, %s14, [#allocation3]
    $region5: #{tpu_custom_call.1} parent=1 // pred_fallthru
      _
    // Predicated region
    $region6: #{tpu_custom_call.1} parent=1 // pred_check
      _
    $region7: #{tpu_custom_call.1} parent=1 // pred_check_branch
      %18 = sbr.rel (0) target = $region9
    $region8: #{tpu_custom_call.1} parent=1 // pred_region
      %19 = dma.done [#allocation3], 256
    $region9: #{tpu_custom_call.1} parent=1 // pred_fallthru
      _
    %v20 = vld [vmem:[#allocation2] sm:$0xff]
    %v21 = vld [vmem:[#allocation2 + $0x8] sm:$0xff]
    %v22 = vmax.f32 %v20, 1e-06
    %v23 = vmax.f32 %v21, 1e-06
    %v24 = vmul.f32 %v22, %v22
    %v25 = vmul.f32 %v23, %v23
    %v26 = vmul.f32 %v24, %v22
    %v27 = vmul.f32 %v25, %v23
    %v28 = vadd.f32 %v26, %v27
    %29 = vadd.xlane.f32.xlu0 %v28
    %v30 = vpop.xlane.xlu0 %29
    %v31 = vrcp.pop 256.0
    %v32 = vmul.f32 %v30, %v31
    %v33 = vpow.f32 %v32, 0.33333334
    %vm34 = vcmask 7168
    %35 = vst.msk [vmem:[%s1] sm:$0xff] %vm34, %v33
    // Predicated region
    $region10: #{tpu_custom_call.1} parent=1 // pred_check
      _
    $region11: #{tpu_custom_call.1} parent=1 // pred_check_branch
      %37 = sbr.rel (0) target = $region13
    $region12: #{tpu_custom_call.1} parent=1 // pred_region
      _
    $region13: #{tpu_custom_call.1} parent=1 // pred_fallthru
      _
    // Predicated region
    $region14: #{tpu_custom_call.1} parent=1 // pred_check
      _
    $region15: #{tpu_custom_call.1} parent=1 // pred_check_branch
      %39 = sbr.rel (0) target = $region17
    $region16: #{tpu_custom_call.1} parent=1 // pred_region
      _
    $region17: #{tpu_custom_call.1} parent=1 // pred_fallthru
      _
    %40 = vsyncpa [#allocation3], 1

</llo_original>
